<compile_context>
chip_gen: v7x
topology: tpu7x:2x2x1
jax: 0.10.0
libtpu: 0.0.40
codegen_flags: <defaults>
</compile_context>

<pallas_src>
import functools

import jax
import jax.numpy as jnp
from jax import lax
from jax.experimental import pallas as pl
from jax.experimental.pallas import tpu as pltpu


def _round_up(x, m):
    return (x + m - 1) // m * m


def _sigmoid(x):
    # Plain VPU/EUP ops; exact (matches the pure-JAX reference to f32 precision).
    return 1.0 / (1.0 + jnp.exp(-x))


def _lstm_cell_kernel(x_ref, h_ref, c_ref, w_ih_ref, w_hh_ref,
                      b_ih_ref, b_hh_ref, h_out_ref, c_out_ref, *, hidden_size):
    # x_ref:    (TM, K_in)      row tile of inputs
    # h_ref:    (TM, H)         row tile of previous hidden state
    # c_ref:    (TM, H)         row tile of previous cell state
    # w_ih_ref: (4H, K_in)      PyTorch-layout weight (no wrapper transpose)
    # w_hh_ref: (4H, H)
    # b_*_ref:  (1, 4H)
    # outputs:  (TM, H) each
    dn = (((1,), (1,)), ((), ()))  # contract feature dim of x with dim 1 of W  (== trans_b)

    gates = lax.dot_general(x_ref[...], w_ih_ref[...], dimension_numbers=dn,
                            preferred_element_type=jnp.float32)
    gates = gates + lax.dot_general(h_ref[...], w_hh_ref[...], dimension_numbers=dn,
                                    preferred_element_type=jnp.float32)
    gates = gates + (b_ih_ref[...].astype(jnp.float32) +
                     b_hh_ref[...].astype(jnp.float32))

    hs = hidden_size
    in_gate = _sigmoid(gates[:, 0 * hs:1 * hs])
    forget_gate = _sigmoid(gates[:, 1 * hs:2 * hs] - 1.0)
    out_gate = _sigmoid(gates[:, 2 * hs:3 * hs])
    in_transform = jnp.tanh(gates[:, 3 * hs:4 * hs])

    c_new = forget_gate * c_ref[...].astype(jnp.float32) + in_gate * in_transform
    h_new = out_gate * jnp.tanh(c_new)

    c_out_ref[...] = c_new.astype(c_out_ref.dtype)
    h_out_ref[...] = h_new.astype(h_out_ref.dtype)


def lstm_cell(inputs, state, w_ih, b_ih, w_hh, b_hh, *, tm=128):
    """Fused LSTMCell.forward.

    inputs: (B, num_inputs)
    state:  (hx, cx) each (B, hidden)
    w_ih:   (4*hidden, num_inputs), b_ih: (4*hidden,)   -- PyTorch convention
    w_hh:   (4*hidden, hidden),     b_hh: (4*hidden,)
    returns (h_new, c_new), each (B, hidden)
    """
    hx, cx = state
    batch, k_in = inputs.shape
    hidden = hx.shape[-1]
    four_h = 4 * hidden
    assert w_ih.shape == (four_h, k_in)
    assert w_hh.shape == (four_h, hidden)
    assert hx.shape == (batch, hidden) and cx.shape == (batch, hidden)

    # Row tile: multiple of 8 (sublane), capped at the (8-padded) batch.
    tm = min(tm, _round_up(batch, 8))
    tm = _round_up(tm, 8)
    b_pad = _round_up(batch, tm)
    grid_m = b_pad // tm

    def pad_rows(a):
        if a.shape[0] == b_pad:
            return a
        return jnp.pad(a, ((0, b_pad - a.shape[0]), (0, 0)))

    x_p = pad_rows(inputs)
    h_p = pad_rows(hx)
    c_p = pad_rows(cx)
    b_ih2 = b_ih.reshape(1, four_h)
    b_hh2 = b_hh.reshape(1, four_h)

    out_dtype = hx.dtype
    h_new, c_new = pl.pallas_call(
        functools.partial(_lstm_cell_kernel, hidden_size=hidden),
        out_shape=(
            jax.ShapeDtypeStruct((b_pad, hidden), out_dtype),
            jax.ShapeDtypeStruct((b_pad, hidden), out_dtype),
        ),
        grid_spec=pltpu.PrefetchScalarGridSpec(
            num_scalar_prefetch=0,
            grid=(grid_m,),
            in_specs=[
                pl.BlockSpec((tm, k_in), lambda m: (m, 0)),        # x rows
                pl.BlockSpec((tm, hidden), lambda m: (m, 0)),      # h rows
                pl.BlockSpec((tm, hidden), lambda m: (m, 0)),      # c rows
                pl.BlockSpec((four_h, k_in), lambda m: (0, 0)),    # W_ih (resident)
                pl.BlockSpec((four_h, hidden), lambda m: (0, 0)),  # W_hh (resident)
                pl.BlockSpec((1, four_h), lambda m: (0, 0)),       # b_ih (resident)
                pl.BlockSpec((1, four_h), lambda m: (0, 0)),       # b_hh (resident)
            ],
            out_specs=[
                pl.BlockSpec((tm, hidden), lambda m: (m, 0)),      # h'
                pl.BlockSpec((tm, hidden), lambda m: (m, 0)),      # c'
            ],
        ),
        compiler_params=pltpu.CompilerParams(
            dimension_semantics=("parallel",),       # row tiles shard across TCs
            vmem_limit_bytes=64 * 1024 * 1024,
        ),
    )(x_p, h_p, c_p, w_ih, w_hh, b_ih2, b_hh2)

    if b_pad != batch:
        h_new = h_new[:batch]
        c_new = c_new[:batch]
    return h_new, c_new


def _init_linear_params(kw, kb, in_features, out_features, dtype=jnp.float32):
    """Deterministic init matching nn.Linear's default (uniform +-1/sqrt(fan_in))."""
    bound = 1.0 / (in_features ** 0.5)
    weight = jax.random.uniform(kw, (out_features, in_features), dtype=dtype,
                                minval=-bound, maxval=bound)
    bias = jax.random.uniform(kb, (out_features,), dtype=dtype,
                              minval=-bound, maxval=bound)
    return weight, bias


if __name__ == "__main__":
    key = jax.random.PRNGKey(0)
    k_x, k_h, k_c, k_wi, k_bi, k_wh, k_bh = jax.random.split(key, 7)

    batch, num_inputs, hidden = 16, 64, 32   # 4*hidden = 128 -> lane-dense gates
    dtype = jnp.float32

    x = jax.random.normal(k_x, (batch, num_inputs), dtype=dtype)
    hx = jax.random.normal(k_h, (batch, hidden), dtype=dtype)
    cx = jax.random.normal(k_c, (batch, hidden), dtype=dtype)

    w_ih, b_ih = _init_linear_params(k_wi, k_bi, num_inputs, 4 * hidden, dtype)
    w_hh, b_hh = _init_linear_params(k_wh, k_bh, hidden, 4 * hidden, dtype)

    h_new, c_new = lstm_cell(x, (hx, cx), w_ih, b_ih, w_hh, b_hh)
    h_new, c_new = jax.block_until_ready((h_new, c_new))

    # Pure-JAX reference matching the PyTorch LSTMCell.forward semantics.
    gates = x @ w_ih.T + b_ih + hx @ w_hh.T + b_hh
    i_g = jax.nn.sigmoid(gates[:, 0 * hidden:1 * hidden])
    f_g = jax.nn.sigmoid(gates[:, 1 * hidden:2 * hidden] - 1.0)
    o_g = jax.nn.sigmoid(gates[:, 2 * hidden:3 * hidden])
    g_g = jnp.tanh(gates[:, 3 * hidden:4 * hidden])
    c_ref = f_g * cx + i_g * g_g
    h_ref = o_g * jnp.tanh(c_ref)

    assert h_new.shape == (batch, hidden) and c_new.shape == (batch, hidden)
    assert jnp.allclose(c_new, c_ref, atol=1e-5, rtol=1e-5)
    assert jnp.allclose(h_new, h_ref, atol=1e-5, rtol=1e-5)

    print("KERNEL_OK")
</pallas_src>

<mosaic_0001>
module attributes {stable_mosaic.version = 11 : i64} {
  func.func @_lstm_cell_kernel(%arg0: i32, %arg1: memref<16x64xf32, #tpu.memory_space<vmem>>, %arg2: memref<16x32xf32, #tpu.memory_space<vmem>>, %arg3: memref<16x32xf32, #tpu.memory_space<vmem>>, %arg4: memref<128x64xf32, #tpu.memory_space<vmem>>, %arg5: memref<128x32xf32, #tpu.memory_space<vmem>>, %arg6: memref<1x128xf32, #tpu.memory_space<vmem>>, %arg7: memref<1x128xf32, #tpu.memory_space<vmem>>, %arg8: memref<16x32xf32, #tpu.memory_space<vmem>>, %arg9: memref<16x32xf32, #tpu.memory_space<vmem>>) attributes {dimension_semantics = [#tpu.dimension_semantics<parallel>], iteration_bounds = array<i64: 1>, scalar_prefetch = 0 : i64, scratch_operands = 0 : i64, tpu.core_type = #tpu.core_type<tc>, window_params = [{transform_indices = @transform_0, window_bounds = array<i64: 16, 64>}, {transform_indices = @transform_1, window_bounds = array<i64: 16, 32>}, {transform_indices = @transform_2, window_bounds = array<i64: 16, 32>}, {pipeline_mode = #tpu.pipeline_mode<synchronous>, transform_indices = @transform_3, window_bounds = array<i64: 128, 64>}, {pipeline_mode = #tpu.pipeline_mode<synchronous>, transform_indices = @transform_4, window_bounds = array<i64: 128, 32>}, {pipeline_mode = #tpu.pipeline_mode<synchronous>, transform_indices = @transform_5, window_bounds = array<i64: 1, 128>}, {pipeline_mode = #tpu.pipeline_mode<synchronous>, transform_indices = @transform_6, window_bounds = array<i64: 1, 128>}, {transform_indices = @transform_7, window_bounds = array<i64: 16, 32>}, {transform_indices = @transform_8, window_bounds = array<i64: 16, 32>}]} {
    %c0 = arith.constant 0 : index
    %c0_0 = arith.constant 0 : index
    %0 = vector.load %arg1[%c0, %c0_0] : memref<16x64xf32, #tpu.memory_space<vmem>>, vector<16x64xf32>
    %c0_1 = arith.constant 0 : index
    %c0_2 = arith.constant 0 : index
    %1 = vector.load %arg4[%c0_1, %c0_2] : memref<128x64xf32, #tpu.memory_space<vmem>>, vector<128x64xf32>
    %cst = arith.constant dense<0.000000e+00> : vector<16x128xf32>
    %2 = tpu.matmul %0, %1, %cst {dimension_numbers = #tpu.dot_dimension_numbers<[1], [1], [0], [0], [0, 0, 1, 0], [], []>} : vector<16x64xf32>, vector<128x64xf32>, vector<16x128xf32> -> vector<16x128xf32>
    %c0_3 = arith.constant 0 : index
    %c0_4 = arith.constant 0 : index
    %3 = vector.load %arg2[%c0_3, %c0_4] : memref<16x32xf32, #tpu.memory_space<vmem>>, vector<16x32xf32>
    %c0_5 = arith.constant 0 : index
    %c0_6 = arith.constant 0 : index
    %4 = vector.load %arg5[%c0_5, %c0_6] : memref<128x32xf32, #tpu.memory_space<vmem>>, vector<128x32xf32>
    %cst_7 = arith.constant dense<0.000000e+00> : vector<16x128xf32>
    %5 = tpu.matmul %3, %4, %cst_7 {dimension_numbers = #tpu.dot_dimension_numbers<[1], [1], [0], [0], [0, 0, 1, 0], [], []>} : vector<16x32xf32>, vector<128x32xf32>, vector<16x128xf32> -> vector<16x128xf32>
    %6 = arith.addf %2, %5 : vector<16x128xf32>
    %c0_8 = arith.constant 0 : index
    %c0_9 = arith.constant 0 : index
    %7 = vector.load %arg6[%c0_8, %c0_9] : memref<1x128xf32, #tpu.memory_space<vmem>>, vector<1x128xf32>
    %c0_10 = arith.constant 0 : index
    %c0_11 = arith.constant 0 : index
    %8 = vector.load %arg7[%c0_10, %c0_11] : memref<1x128xf32, #tpu.memory_space<vmem>>, vector<1x128xf32>
    %9 = arith.addf %7, %8 : vector<1x128xf32>
    %10 = vector.broadcast %9 : vector<1x128xf32> to vector<16x128xf32>
    %11 = arith.addf %6, %10 : vector<16x128xf32>
    %12 = vector.extract_strided_slice %11 {offsets = [0, 0], sizes = [16, 32], strides = [1, 1]} : vector<16x128xf32> to vector<16x32xf32>
    %cst_12 = arith.constant 0.000000e+00 : f32
    %13 = vector.broadcast %cst_12 : f32 to vector<16x32xf32>
    %14 = arith.subf %13, %12 : vector<16x32xf32>
    %15 = math.exp %14 : vector<16x32xf32>
    %cst_13 = arith.constant 1.000000e+00 : f32
    %16 = vector.broadcast %cst_13 : f32 to vector<16x32xf32>
    %17 = arith.addf %16, %15 : vector<16x32xf32>
    %cst_14 = arith.constant 1.000000e+00 : f32
    %18 = vector.broadcast %cst_14 : f32 to vector<16x32xf32>
    %19 = arith.divf %18, %17 : vector<16x32xf32>
    %20 = vector.extract_strided_slice %11 {offsets = [0, 32], sizes = [16, 32], strides = [1, 1]} : vector<16x128xf32> to vector<16x32xf32>
    %cst_15 = arith.constant 1.000000e+00 : f32
    %21 = vector.broadcast %cst_15 : f32 to vector<16x32xf32>
    %22 = arith.subf %20, %21 : vector<16x32xf32>
    %cst_16 = arith.constant 0.000000e+00 : f32
    %23 = vector.broadcast %cst_16 : f32 to vector<16x32xf32>
    %24 = arith.subf %23, %22 : vector<16x32xf32>
    %25 = math.exp %24 : vector<16x32xf32>
    %cst_17 = arith.constant 1.000000e+00 : f32
    %26 = vector.broadcast %cst_17 : f32 to vector<16x32xf32>
    %27 = arith.addf %26, %25 : vector<16x32xf32>
    %cst_18 = arith.constant 1.000000e+00 : f32
    %28 = vector.broadcast %cst_18 : f32 to vector<16x32xf32>
    %29 = arith.divf %28, %27 : vector<16x32xf32>
    %30 = vector.extract_strided_slice %11 {offsets = [0, 64], sizes = [16, 32], strides = [1, 1]} : vector<16x128xf32> to vector<16x32xf32>
    %cst_19 = arith.constant 0.000000e+00 : f32
    %31 = vector.broadcast %cst_19 : f32 to vector<16x32xf32>
    %32 = arith.subf %31, %30 : vector<16x32xf32>
    %33 = math.exp %32 : vector<16x32xf32>
    %cst_20 = arith.constant 1.000000e+00 : f32
    %34 = vector.broadcast %cst_20 : f32 to vector<16x32xf32>
    %35 = arith.addf %34, %33 : vector<16x32xf32>
    %cst_21 = arith.constant 1.000000e+00 : f32
    %36 = vector.broadcast %cst_21 : f32 to vector<16x32xf32>
    %37 = arith.divf %36, %35 : vector<16x32xf32>
    %38 = vector.extract_strided_slice %11 {offsets = [0, 96], sizes = [16, 32], strides = [1, 1]} : vector<16x128xf32> to vector<16x32xf32>
    %39 = math.tanh %38 : vector<16x32xf32>
    %c0_22 = arith.constant 0 : index
    %c0_23 = arith.constant 0 : index
    %40 = vector.load %arg3[%c0_22, %c0_23] : memref<16x32xf32, #tpu.memory_space<vmem>>, vector<16x32xf32>
    %41 = arith.mulf %29, %40 : vector<16x32xf32>
    %42 = arith.mulf %19, %39 : vector<16x32xf32>
    %43 = arith.addf %41, %42 : vector<16x32xf32>
    %44 = math.tanh %43 : vector<16x32xf32>
    %45 = arith.mulf %37, %44 : vector<16x32xf32>
    %c0_24 = arith.constant 0 : index
    %c0_25 = arith.constant 0 : index
    %46 = vector.load %arg9[%c0_24, %c0_25] : memref<16x32xf32, #tpu.memory_space<vmem>>, vector<16x32xf32>
    tpu.vector_store %arg9[%c0_24, %c0_25], %43 {strides = array<i32>} : memref<16x32xf32, #tpu.memory_space<vmem>>, vector<16x32xf32>,
    %c0_26 = arith.constant 0 : index
    %c0_27 = arith.constant 0 : index
    %47 = vector.load %arg8[%c0_26, %c0_27] : memref<16x32xf32, #tpu.memory_space<vmem>>, vector<16x32xf32>
    tpu.vector_store %arg8[%c0_26, %c0_27], %45 {strides = array<i32>} : memref<16x32xf32, #tpu.memory_space<vmem>>, vector<16x32xf32>,
    return
  }
  func.func @transform_0(%arg0: i32) -> (i32, i32) {
    %c0_i32 = arith.constant 0 : i32
    %c0_i32_0 = arith.constant 0 : i32
    return %arg0, %c0_i32 : i32, i32
  }
  func.func @transform_1(%arg0: i32) -> (i32, i32) {
    %c0_i32 = arith.constant 0 : i32
    %c0_i32_0 = arith.constant 0 : i32
    return %arg0, %c0_i32 : i32, i32
  }
  func.func @transform_2(%arg0: i32) -> (i32, i32) {
    %c0_i32 = arith.constant 0 : i32
    %c0_i32_0 = arith.constant 0 : i32
    return %arg0, %c0_i32 : i32, i32
  }
  func.func @transform_3(%arg0: i32) -> (i32, i32) {
    %c0_i32 = arith.constant 0 : i32
    %c0_i32_0 = arith.constant 0 : i32
    %c0_i32_1 = arith.constant 0 : i32
    return %c0_i32, %c0_i32_0 : i32, i32
  }
  func.func @transform_4(%arg0: i32) -> (i32, i32) {
    %c0_i32 = arith.constant 0 : i32
    %c0_i32_0 = arith.constant 0 : i32
    %c0_i32_1 = arith.constant 0 : i32
    return %c0_i32, %c0_i32_0 : i32, i32
  }
  func.func @transform_5(%arg0: i32) -> (i32, i32) {
    %c0_i32 = arith.constant 0 : i32
    %c0_i32_0 = arith.constant 0 : i32
    %c0_i32_1 = arith.constant 0 : i32
    return %c0_i32, %c0_i32_0 : i32, i32
  }
  func.func @transform_6(%arg0: i32) -> (i32, i32) {
    %c0_i32 = arith.constant 0 : i32
    %c0_i32_0 = arith.constant 0 : i32
    %c0_i32_1 = arith.constant 0 : i32
    return %c0_i32, %c0_i32_0 : i32, i32
  }
  func.func @transform_7(%arg0: i32) -> (i32, i32) {
    %c0_i32 = arith.constant 0 : i32
    %c0_i32_0 = arith.constant 0 : i32
    return %arg0, %c0_i32 : i32, i32
  }
  func.func @transform_8(%arg0: i32) -> (i32, i32) {
    %c0_i32 = arith.constant 0 : i32
    %c0_i32_0 = arith.constant 0 : i32
    return %arg0, %c0_i32 : i32, i32
  }
}

</mosaic_0001>

<llo_original>
// kernel: tpu_custom_call.1
$region0: #{tpu_custom_call.1}
  #allocation0 [shape = 'u32[]', space=smem, size = 0x4, offset = 0x4, fixed_abs, tag = 'smem constant byte address 0x4 - core index']
  #allocation1 [shape = 'u32[144,128]{1,0:T(1,128)}', space=vmem, size = 0x12000, scoped, tag = 'internal scratch']
  %s0 = inlined_call_operand.hbm [shape: f32[16,64], index: 0, kind: input, shape index: {}]
  %s1 = inlined_call_operand.hbm [shape: f32[16,32], index: 1, kind: input, shape index: {}]
  %s2 = inlined_call_operand.hbm [shape: f32[16,32], index: 2, kind: input, shape index: {}]
  %s3 = inlined_call_operand.hbm [shape: f32[128,64], index: 3, kind: input, shape index: {}]
  %s4 = inlined_call_operand.hbm [shape: f32[128,32], index: 4, kind: input, shape index: {}]
  %s5 = inlined_call_operand.hbm [shape: f32[1,128], index: 5, kind: input, shape index: {}]
  %s6 = inlined_call_operand.hbm [shape: f32[1,128], index: 6, kind: input, shape index: {}]
  %s7 = inlined_call_operand.hbm [shape: f32[16,32], index: 7, kind: output, shape index: {0}]
  %s8 = inlined_call_operand.hbm [shape: f32[16,32], index: 8, kind: output, shape index: {1}]
  %9 = xla_tuple %s7, %s8
  %s10 = sld [smem:[#allocation0]]
  $region74: #{tpu_custom_call.1} parent=0
    _
  %s12 = ssub.s32 1, %s10
  %s13 = scalar_select 0, %s12, %s10
  $region1: #{tpu_custom_call.1} parent=0
    #allocation2 [shape = 'u8[8192]{0}', space=vmem, size = 0x2000, scoped, tag = 'input window, operand 0, single buffered']
    #allocation3 [shape = 's32[1]{0}', space=sflag, size = 0x4, scoped, tag = 'scoped memory for tpu_custom_call.1']
    #allocation4 [shape = 's32[1]{0}', space=sflag, size = 0x4, scoped, tag = 'scoped memory for tpu_custom_call.1']
    #allocation5 [shape = 'u8[8192]{0}', space=vmem, size = 0x2000, scoped, tag = 'input window, operand 1, single buffered']
    #allocation6 [shape = 's32[1]{0}', space=sflag, size = 0x4, scoped, tag = 'scoped memory for tpu_custom_call.1']
    #allocation7 [shape = 'u8[8192]{0}', space=vmem, size = 0x2000, scoped, tag = 'input window, operand 2, single buffered']
    #allocation8 [shape = 'u8[65536]{0}', space=vmem, size = 0x10000, scoped, tag = 'input window, operand 3, single buffered']
    #allocation9 [shape = 's32[1]{0}', space=sflag, size = 0x4, scoped, tag = 'scoped memory for tpu_custom_call.1']
    #allocation10 [shape = 'u8[65536]{0}', space=vmem, size = 0x10000, scoped, tag = 'input window, operand 4, single buffered']
    #allocation11 [shape = 'u8[512]{0}', space=vmem, size = 0x400, scoped, tag = 'input window, operand 5, single buffered']
    #allocation12 [shape = 's32[1]{0}', space=sflag, size = 0x4, scoped, tag = 'scoped memory for tpu_custom_call.1']
    #allocation13 [shape = 'u8[512]{0}', space=vmem, size = 0x400, scoped, tag = 'input window, operand 6, single buffered']
    #allocation14 [shape = 'u8[8192]{0}', space=vmem, size = 0x2000, scoped, tag = 'output window, operand 0, single buffered']
    #allocation15 [shape = 'u8[8192]{0}', space=vmem, size = 0x2000, scoped, tag = 'output window, operand 1, single buffered']
    #allocation16 [shape = 's32[1]{0}', space=sflag, size = 0x4, scoped, tag = 'scoped memory for tpu_custom_call.1']
    %14 = vsyncpa [#allocation3], 0
    %15 = vsyncpa [#allocation6], 0
    %16 = vsyncpa [#allocation9], 0
    %17 = vsyncpa [#allocation12], 0
    %18 = vsyncpa [#allocation4], 0
    %19 = vsyncpa [#allocation16], 0
    // Predicated region
    $region2: #{tpu_custom_call.1} parent=1 // pred_check
      _
    $region3: #{tpu_custom_call.1} parent=1 // pred_check_branch
      %21 = sbr.rel (0) target = $region5
    $region4: #{tpu_custom_call.1} parent=1 // pred_region
      %s23 = ssub.s32 256, 256
      %24 = vsyncadd [#allocation3], %s23
      %s25 = sshll.u32 [#allocation2], 4
      %s26 = int_to_ptr.vmem [resolvable:$true] %s25
      %31 = dma.hbm_to_vmem [thread:$0]  %s0, 256, %s26, [#allocation3], 128, 128, 8
    $region5: #{tpu_custom_call.1} parent=1 // pred_fallthru
      _
    // Predicated region
    $region6: #{tpu_custom_call.1} parent=1 // pred_check
      _
    $region7: #{tpu_custom_call.1} parent=1 // pred_check_branch
      %33 = sbr.rel (0) target = $region9
    $region8: #{tpu_custom_call.1} parent=1 // pred_region
      %s35 = ssub.s32 256, 256
      %36 = vsyncadd [#allocation6], %s35
      %s37 = sshll.u32 [#allocation5], 4
      %s38 = int_to_ptr.vmem [resolvable:$true] %s37
      %43 = dma.hbm_to_vmem [thread:$0]  %s1, 256, %s38, [#allocation6], 128, 128, 8
    $region9: #{tpu_custom_call.1} parent=1 // pred_fallthru
      _
    // Predicated region
    $region10: #{tpu_custom_call.1} parent=1 // pred_check
      _
    $region11: #{tpu_custom_call.1} parent=1 // pred_check_branch
      %45 = sbr.rel (0) target = $region13
    $region12: #{tpu_custom_call.1} parent=1 // pred_region
      %s47 = ssub.s32 256, 256
      %48 = vsyncadd [#allocation6], %s47
      %s49 = sshll.u32 [#allocation7], 4
      %s50 = int_to_ptr.vmem [resolvable:$true] %s49
      %55 = dma.hbm_to_vmem [thread:$0]  %s2, 256, %s50, [#allocation6], 128, 128, 8
    $region13: #{tpu_custom_call.1} parent=1 // pred_fallthru
      _
    // Predicated region
    $region14: #{tpu_custom_call.1} parent=1 // pred_check
      _
    $region15: #{tpu_custom_call.1} parent=1 // pred_check_branch
      %57 = sbr.rel (0) target = $region17
    $region16: #{tpu_custom_call.1} parent=1 // pred_region
      %s59 = ssub.s32 2048, 2048
      %60 = vsyncadd [#allocation9], %s59
      %s61 = sshll.u32 [#allocation8], 4
      %s62 = int_to_ptr.vmem [resolvable:$true] %s61
      %67 = dma.hbm_to_vmem [thread:$0]  %s3, 2048, %s62, [#allocation9], 128, 128, 8
    $region17: #{tpu_custom_call.1} parent=1 // pred_fallthru
      _
    // Predicated region
    $region18: #{tpu_custom_call.1} parent=1 // pred_check
      _
    $region19: #{tpu_custom_call.1} parent=1 // pred_check_branch
      %69 = sbr.rel (0) target = $region21
    $region20: #{tpu_custom_call.1} parent=1 // pred_region
      %s71 = ssub.s32 2048, 2048
      %72 = vsyncadd [#allocation9], %s71
      %s73 = sshll.u32 [#allocation10], 4
      %s74 = int_to_ptr.vmem [resolvable:$true] %s73
      %79 = dma.hbm_to_vmem [thread:$0]  %s4, 2048, %s74, [#allocation9], 128, 128, 8
    $region21: #{tpu_custom_call.1} parent=1 // pred_fallthru
      _
    // Predicated region
    $region22: #{tpu_custom_call.1} parent=1 // pred_check
      _
    $region23: #{tpu_custom_call.1} parent=1 // pred_check_branch
      %81 = sbr.rel (0) target = $region25
    $region24: #{tpu_custom_call.1} parent=1 // pred_region
      %s83 = ssub.s32 16, 16
      %84 = vsyncadd [#allocation12], %s83
      %s86 = sshll.u32 [#allocation11], 4
      %s87 = int_to_ptr.vmem [resolvable:$true] %s86
      %89 = dma.hbm_to_vmem [thread:$0]  %s5, 16, %s87, [#allocation12]
    $region25: #{tpu_custom_call.1} parent=1 // pred_fallthru
      _
    // Predicated region
    $region26: #{tpu_custom_call.1} parent=1 // pred_check
      _
    $region27: #{tpu_custom_call.1} parent=1 // pred_check_branch
      %91 = sbr.rel (0) target = $region29
    $region28: #{tpu_custom_call.1} parent=1 // pred_region
      %s93 = ssub.s32 16, 16
      %94 = vsyncadd [#allocation12], %s93
      %s96 = sshll.u32 [#allocation13], 4
      %s97 = int_to_ptr.vmem [resolvable:$true] %s96
      %99 = dma.hbm_to_vmem [thread:$0]  %s6, 16, %s97, [#allocation12]
    $region29: #{tpu_custom_call.1} parent=1 // pred_fallthru
      _
    // Predicated region
    $region30: #{tpu_custom_call.1} parent=1 // pred_check
      _
    $region31: #{tpu_custom_call.1} parent=1 // pred_check_branch
      %101 = sbr.rel (0) target = $region33
    $region32: #{tpu_custom_call.1} parent=1 // pred_region
      %102 = dma.done [#allocation3], 256
    $region33: #{tpu_custom_call.1} parent=1 // pred_fallthru
      _
    // Predicated region
    $region34: #{tpu_custom_call.1} parent=1 // pred_check
      _
    $region35: #{tpu_custom_call.1} parent=1 // pred_check_branch
      %104 = sbr.rel (0) target = $region37
    $region36: #{tpu_custom_call.1} parent=1 // pred_region
      %105 = dma.done [#allocation6], 256
    $region37: #{tpu_custom_call.1} parent=1 // pred_fallthru
      _
    // Predicated region
    $region38: #{tpu_custom_call.1} parent=1 // pred_check
      _
    $region39: #{tpu_custom_call.1} parent=1 // pred_check_branch
      %107 = sbr.rel (0) target = $region41
    $region40: #{tpu_custom_call.1} parent=1 // pred_region
      %108 = dma.done [#allocation6], 256
    $region41: #{tpu_custom_call.1} parent=1 // pred_fallthru
      _
    // Predicated region
    $region42: #{tpu_custom_call.1} parent=1 // pred_check
      _
    $region43: #{tpu_custom_call.1} parent=1 // pred_check_branch
      %110 = sbr.rel (0) target = $region45
    $region44: #{tpu_custom_call.1} parent=1 // pred_region
      %111 = dma.done [#allocation9], 2048
    $region45: #{tpu_custom_call.1} parent=1 // pred_fallthru
      _
    // Predicated region
    $region46: #{tpu_custom_call.1} parent=1 // pred_check
      _
    $region47: #{tpu_custom_call.1} parent=1 // pred_check_branch
      %113 = sbr.rel (0) target = $region49
    $region48: #{tpu_custom_call.1} parent=1 // pred_region
      %114 = dma.done [#allocation9], 2048
    $region49: #{tpu_custom_call.1} parent=1 // pred_fallthru
      _
    // Predicated region
    $region50: #{tpu_custom_call.1} parent=1 // pred_check
      _
    $region51: #{tpu_custom_call.1} parent=1 // pred_check_branch
      %116 = sbr.rel (0) target = $region53
    $region52: #{tpu_custom_call.1} parent=1 // pred_region
      %117 = dma.done [#allocation12], 16
    $region53: #{tpu_custom_call.1} parent=1 // pred_fallthru
      _
    // Predicated region
    $region54: #{tpu_custom_call.1} parent=1 // pred_check
      _
    $region55: #{tpu_custom_call.1} parent=1 // pred_check_branch
      %119 = sbr.rel (0) target = $region57
    $region56: #{tpu_custom_call.1} parent=1 // pred_region
      %120 = dma.done [#allocation12], 16
    $region57: #{tpu_custom_call.1} parent=1 // pred_fallthru
      _
    %v121 = vld [vmem:[#allocation2] sm:$0xff]
    %v122 = vld [vmem:[#allocation2 + $0x8] sm:$0xff]
    %v123 = vld [vmem:[#allocation8] sm:$0xff]
    %v124 = vld [vmem:[#allocation8 + $0x8] sm:$0xff]
    %v125 = vld [vmem:[#allocation8 + $0x10] sm:$0xff]
    %v126 = vld [vmem:[#allocation8 + $0x18] sm:$0xff]
    %v127 = vld [vmem:[#allocation8 + $0x20] sm:$0xff]
    %v128 = vld [vmem:[#allocation8 + $0x28] sm:$0xff]
    %v129 = vld [vmem:[#allocation8 + $0x30] sm:$0xff]
    %v130 = vld [vmem:[#allocation8 + $0x38] sm:$0xff]
    %v131 = vld [vmem:[#allocation8 + $0x40] sm:$0xff]
    %v132 = vld [vmem:[#allocation8 + $0x48] sm:$0xff]
    %v133 = vld [vmem:[#allocation8 + $0x50] sm:$0xff]
    %v134 = vld [vmem:[#allocation8 + $0x58] sm:$0xff]
    %v135 = vld [vmem:[#allocation8 + $0x60] sm:$0xff]
    %v136 = vld [vmem:[#allocation8 + $0x68] sm:$0xff]
    %v137 = vld [vmem:[#allocation8 + $0x70] sm:$0xff]
    %v138 = vld [vmem:[#allocation8 + $0x78] sm:$0xff]
    %v139 = vld [vmem:[#allocation5] sm:$0xff]
    %v140 = vld [vmem:[#allocation5 + $0x8] sm:$0xff]
    %v141 = vld [vmem:[#allocation10] sm:$0xff]
    %v142 = vld [vmem:[#allocation10 + $0x8] sm:$0xff]
    %v143 = vld [vmem:[#allocation10 + $0x10] sm:$0xff]
    %v144 = vld [vmem:[#allocation10 + $0x18] sm:$0xff]
    %v145 = vld [vmem:[#allocation10 + $0x20] sm:$0xff]
    %v146 = vld [vmem:[#allocation10 + $0x28] sm:$0xff]
    %v147 = vld [vmem:[#allocation10 + $0x30] sm:$0xff]
    %v148 = vld [vmem:[#allocation10 + $0x38] sm:$0xff]
    %v149 = vld [vmem:[#allocation10 + $0x40] sm:$0xff]
    %v150 = vld [vmem:[#allocation10 + $0x48] sm:$0xff]
    %v151 = vld [vmem:[#allocation10 + $0x50] sm:$0xff]
    %v152 = vld [vmem:[#allocation10 + $0x58] sm:$0xff]
    %v153 = vld [vmem:[#allocation10 + $0x60] sm:$0xff]
    %v154 = vld [vmem:[#allocation10 + $0x68] sm:$0xff]
    %v155 = vld [vmem:[#allocation10 + $0x70] sm:$0xff]
    %v156 = vld [vmem:[#allocation10 + $0x78] sm:$0xff]
    %vm157 = vcmask 261120
    %v159 = vsel %vm157, %v139, 0
    %v162 = vsel %vm157, %v140, 0
    %v165 = vsel %vm157, %v141, 0
    %v168 = vsel %vm157, %v142, 0
    %v171 = vsel %vm157, %v143, 0
    %v174 = vsel %vm157, %v144, 0
    %v177 = vsel %vm157, %v145, 0
    %v180 = vsel %vm157, %v146, 0
    %v183 = vsel %vm157, %v147, 0
    %v186 = vsel %vm157, %v148, 0
    %v189 = vsel %vm157, %v149, 0
    %v192 = vsel %vm157, %v150, 0
    %v195 = vsel %vm157, %v151, 0
    %v198 = vsel %vm157, %v152, 0
    %v201 = vsel %vm157, %v153, 0
    %v204 = vsel %vm157, %v154, 0
    %v207 = vsel %vm157, %v155, 0
    %v210 = vsel %vm157, %v156, 0
    %212 = vmatprep.subr.mxu0 0.0
    %213 = vmatpush1.xpose.msra.mxu0 %v165
    %214 = vmatprep.subr.mxu0 0.0
    %215 = vmatpush1.xpose.msra.mxu0 %v168
    %216 = vmatprep.subr.mxu0 0.0
    %217 = vmatpush1.xpose.msra.mxu0 %v171
    %218 = vmatprep.subr.mxu0 0.0
    %219 = vmatpush1.xpose.msra.mxu0 %v174
    %220 = vmatprep.subr.mxu0 0.0
    %221 = vmatpush1.xpose.msra.mxu0 %v177
    %222 = vmatprep.subr.mxu0 0.0
    %223 = vmatpush1.xpose.msra.mxu0 %v180
    %224 = vmatprep.subr.mxu0 0.0
    %225 = vmatpush1.xpose.msra.mxu0 %v183
    %226 = vmatprep.subr.mxu0 0.0
    %227 = vmatpush1.xpose.msra.mxu0 %v186
    %228 = vmatprep.subr.mxu0 0.0
    %229 = vmatpush1.xpose.msra.mxu0 %v189
    %230 = vmatprep.subr.mxu0 0.0
    %231 = vmatpush1.xpose.msra.mxu0 %v192
    %232 = vmatprep.subr.mxu0 0.0
    %233 = vmatpush1.xpose.msra.mxu0 %v195
    %234 = vmatprep.subr.mxu0 0.0
    %235 = vmatpush1.xpose.msra.mxu0 %v198
    %236 = vmatprep.subr.mxu0 0.0
    %237 = vmatpush1.xpose.msra.mxu0 %v201
    %238 = vmatprep.subr.mxu0 0.0
    %239 = vmatpush1.xpose.msra.mxu0 %v204
    %240 = vmatprep.subr.mxu0 0.0
    %241 = vmatpush1.xpose.msra.mxu0 %v207
    %242 = vmatprep.subr.mxu0 0.0
    %243 = vmatpush1.xpose.msra.mxu0 %v210
    %244 = vmatprep.subr.mxu0 0.0
    %245 = vmatpush1.xpose.msra.mxu0 0.0
    %246 = vmatprep.subr.mxu0 0.0
    %247 = vmatpush1.xpose.msra.mxu0 0.0
    %248 = vmatprep.subr.mxu0 0.0
    %249 = vmatpush1.xpose.msra.mxu0 0.0
    %250 = vmatprep.subr.mxu0 0.0
    %251 = vmatpush1.xpose.msra.mxu0 0.0
    %252 = vmatprep.subr.mxu0 0.0
    %253 = vmatpush1.xpose.msra.mxu0 0.0
    %254 = vmatprep.subr.mxu0 0.0
    %255 = vmatpush1.xpose.msra.mxu0 0.0
    %256 = vmatprep.subr.mxu0 0.0
    %257 = vmatpush1.xpose.msra.mxu0 0.0
    %258 = vmatprep.subr.mxu0 0.0
    %259 = vmatpush1.xpose.msra.mxu0 0.0
    %260 = vmatprep.subr.mxu0 0.0
    %261 = vmatpush1.xpose.msra.mxu0 0.0
    %262 = vmatprep.subr.mxu0 0.0
    %263 = vmatpush1.xpose.msra.mxu0 0.0
    %264 = vmatprep.subr.mxu0 0.0
    %265 = vmatpush1.xpose.msra.mxu0 0.0
    %266 = vmatprep.subr.mxu0 0.0
    %267 = vmatpush1.xpose.msra.mxu0 0.0
    %268 = vmatprep.subr.mxu0 0.0
    %269 = vmatpush1.xpose.msra.mxu0 0.0
    %270 = vmatprep.subr.mxu0 0.0
    %271 = vmatpush1.xpose.msra.mxu0 0.0
    %272 = vmatprep.subr.mxu0 0.0
    %273 = vmatpush1.xpose.msra.mxu0 0.0
    %274 = vmatprep.subr.mxu0 0.0
    %275 = vmatpush1.xpose.msra.mxu0 0.0
    %276 = vmatprep.mubr.f32.mxu0 0.0
    %277 = vmatmul.mubr.f32.gmra.mrb[0].mxu0 %v159
    %v278 = vpop.f32.mrb[0].mxu0
    %v279 = vadd.f32 0.0, %v278
    %v280 = vpop.f32.mrb[0].mxu0
    %281 = vmatprep.mubr.f32.mxu0 0.0
    %282 = vmatmul.mubr.f32.gmra.mrb[0].mxu0 %v162
    %v283 = vpop.f32.mrb[0].mxu0
    %v284 = vadd.f32 0.0, %v283
    %v285 = vpop.f32.mrb[0].mxu0
    %286 = vdwg.mxu0
    %vm287 = vcmask 523264
    %v289 = vsel %vm287, %v121, 0
    %v292 = vsel %vm287, %v122, 0
    %v295 = vsel %vm287, %v123, 0
    %v298 = vsel %vm287, %v124, 0
    %v301 = vsel %vm287, %v125, 0
    %v304 = vsel %vm287, %v126, 0
    %v307 = vsel %vm287, %v127, 0
    %v310 = vsel %vm287, %v128, 0
    %v313 = vsel %vm287, %v129, 0
    %v316 = vsel %vm287, %v130, 0
    %v319 = vsel %vm287, %v131, 0
    %v322 = vsel %vm287, %v132, 0
    %v325 = vsel %vm287, %v133, 0
    %v328 = vsel %vm287, %v134, 0
    %v331 = vsel %vm287, %v135, 0
    %v334 = vsel %vm287, %v136, 0
    %v337 = vsel %vm287, %v137, 0
    %v340 = vsel %vm287, %v138, 0
    %342 = vmatprep.subr.mxu0 0.0
    %343 = vmatpush1.xpose.msra.mxu0 %v295
    %344 = vmatprep.subr.mxu0 0.0
    %345 = vmatpush1.xpose.msra.mxu0 %v298
    %346 = vmatprep.subr.mxu0 0.0
    %347 = vmatpush1.xpose.msra.mxu0 %v301
    %348 = vmatprep.subr.mxu0 0.0
    %349 = vmatpush1.xpose.msra.mxu0 %v304
    %350 = vmatprep.subr.mxu0 0.0
    %351 = vmatpush1.xpose.msra.mxu0 %v307
    %352 = vmatprep.subr.mxu0 0.0
    %353 = vmatpush1.xpose.msra.mxu0 %v310
    %354 = vmatprep.subr.mxu0 0.0
    %355 = vmatpush1.xpose.msra.mxu0 %v313
    %356 = vmatprep.subr.mxu0 0.0
    %357 = vmatpush1.xpose.msra.mxu0 %v316
    %358 = vmatprep.subr.mxu0 0.0
    %359 = vmatpush1.xpose.msra.mxu0 %v319
    %360 = vmatprep.subr.mxu0 0.0
    %361 = vmatpush1.xpose.msra.mxu0 %v322
    %362 = vmatprep.subr.mxu0 0.0
    %363 = vmatpush1.xpose.msra.mxu0 %v325
    %364 = vmatprep.subr.mxu0 0.0
    %365 = vmatpush1.xpose.msra.mxu0 %v328
    %366 = vmatprep.subr.mxu0 0.0
    %367 = vmatpush1.xpose.msra.mxu0 %v331
    %368 = vmatprep.subr.mxu0 0.0
    %369 = vmatpush1.xpose.msra.mxu0 %v334
    %370 = vmatprep.subr.mxu0 0.0
    %371 = vmatpush1.xpose.msra.mxu0 %v337
    %372 = vmatprep.subr.mxu0 0.0
    %373 = vmatpush1.xpose.msra.mxu0 %v340
    %374 = vmatprep.subr.mxu0 0.0
    %375 = vmatpush1.xpose.msra.mxu0 0.0
    %376 = vmatprep.subr.mxu0 0.0
    %377 = vmatpush1.xpose.msra.mxu0 0.0
    %378 = vmatprep.subr.mxu0 0.0
    %379 = vmatpush1.xpose.msra.mxu0 0.0
    %380 = vmatprep.subr.mxu0 0.0
    %381 = vmatpush1.xpose.msra.mxu0 0.0
    %382 = vmatprep.subr.mxu0 0.0
    %383 = vmatpush1.xpose.msra.mxu0 0.0
    %384 = vmatprep.subr.mxu0 0.0
    %385 = vmatpush1.xpose.msra.mxu0 0.0
    %386 = vmatprep.subr.mxu0 0.0
    %387 = vmatpush1.xpose.msra.mxu0 0.0
    %388 = vmatprep.subr.mxu0 0.0
    %389 = vmatpush1.xpose.msra.mxu0 0.0
    %390 = vmatprep.subr.mxu0 0.0
    %391 = vmatpush1.xpose.msra.mxu0 0.0
    %392 = vmatprep.subr.mxu0 0.0
    %393 = vmatpush1.xpose.msra.mxu0 0.0
    %394 = vmatprep.subr.mxu0 0.0
    %395 = vmatpush1.xpose.msra.mxu0 0.0
    %396 = vmatprep.subr.mxu0 0.0
    %397 = vmatpush1.xpose.msra.mxu0 0.0
    %398 = vmatprep.subr.mxu0 0.0
    %399 = vmatpush1.xpose.msra.mxu0 0.0
    %400 = vmatprep.subr.mxu0 0.0
    %401 = vmatpush1.xpose.msra.mxu0 0.0
    %402 = vmatprep.subr.mxu0 0.0
    %403 = vmatpush1.xpose.msra.mxu0 0.0
    %404 = vmatprep.subr.mxu0 0.0
    %405 = vmatpush1.xpose.msra.mxu0 0.0
    %406 = vmatprep.mubr.f32.mxu0 0.0
    %407 = vmatmul.mubr.f32.gmra.mrb[0].mxu0 %v289
    %v408 = vpop.f32.mrb[0].mxu0
    %v409 = vadd.f32 %v279, %v408
    %v410 = vpop.f32.mrb[0].mxu0
    %411 = vmatprep.mubr.f32.mxu0 0.0
    %412 = vmatmul.mubr.f32.gmra.mrb[0].mxu0 %v292
    %v413 = vpop.f32.mrb[0].mxu0
    %v414 = vadd.f32 %v284, %v413
    %v415 = vpop.f32.mrb[0].mxu0
    %416 = vdwg.mxu0
    %v417 = vld [vmem:[#allocation11] sm:$0x1]
    %v418 = vld [vmem:[#allocation13] sm:$0x1]
    %v419 = vadd.f32 %v417, %v418
    %v421 = vlaneseq
    %v422 = vshrl.u32 %v421, 7
    %v423 = vsub.s32 0, %v422
    %v424 = vrot.slane %v419, %v423
    %v426 = vadd.f32 %v409, %v424
    %v427 = vadd.f32 %v414, %v424
    %v428 = vsub.f32 0.0, %v426
    %v429 = vsub.f32 0.0, %v427
    %v430 = vmul.f32 %v428, 1.442695
    %v431 = vpow.pop %v430
    %v432 = vmul.f32 %v429, 1.442695
    %v433 = vpow.pop %v432
    %v434 = vadd.f32 %v431, 1.0
    %v435 = vadd.f32 %v433, 1.0
    %v436 = vrcp.pop %v434
    %v437 = vmul.f32 1.0, %v436
    %v438 = vrcp.pop %v435
    %v439 = vmul.f32 1.0, %v438
    %v440 = vsub.f32 %v426, 1.0
    %v441 = vsub.f32 %v427, 1.0
    %v442 = vsub.f32 0.0, %v440
    %v443 = vsub.f32 0.0, %v441
    %v444 = vmul.f32 %v442, 1.442695
    %v445 = vpow.pop %v444
    %v446 = vmul.f32 %v443, 1.442695
    %v447 = vpow.pop %v446
    %v448 = vadd.f32 %v445, 1.0
    %v449 = vadd.f32 %v447, 1.0
    %v450 = vrcp.pop %v448
    %v451 = vmul.f32 1.0, %v450
    %v452 = vrcp.pop %v449
    %v453 = vmul.f32 1.0, %v452
    %v454 = vtanh.pop %v426
    %v455 = vtanh.pop %v427
    %v456 = vld [vmem:[#allocation7] sm:$0xff]
    %v457 = vld [vmem:[#allocation7 + $0x8] sm:$0xff]
    %460 = vrot.lane.b32.xlu0 %v456, 32
    %v461 = vpop.permute.xlu0 %460
    %462 = vrot.lane.b32.xlu0 %v457, 32
    %v463 = vpop.permute.xlu0 %462
    %v466 = vmul.f32 %v451, %v461
    %v467 = vmul.f32 %v453, %v463
    %470 = vrot.lane.b32.xlu0 %v454, 32
    %v471 = vpop.permute.xlu0 %470
    %472 = vrot.lane.b32.xlu0 %v455, 32
    %v473 = vpop.permute.xlu0 %472
    %v476 = vmul.f32 %v437, %v471
    %v477 = vmul.f32 %v439, %v473
    %480 = vrot.lane.b32.xlu0 %v476, 32
    %v481 = vpop.permute.xlu0 %480
    %482 = vrot.lane.b32.xlu0 %v477, 32
    %v483 = vpop.permute.xlu0 %482
    %v486 = vadd.f32 %v466, %v481
    %v487 = vadd.f32 %v467, %v483
    %v488 = vtanh.pop %v486
    %v489 = vtanh.pop %v487
    %492 = vrot.lane.b32.xlu0 %v488, 32
    %v493 = vpop.permute.xlu0 %492
    %494 = vrot.lane.b32.xlu0 %v489, 32
    %v495 = vpop.permute.xlu0 %494
    %v498 = vmul.f32 %v437, %v493
    %v499 = vmul.f32 %v439, %v495
    %502 = vrot.lane.b32.xlu0 %v486, 96
    %v503 = vpop.permute.xlu0 %502
    %504 = vrot.lane.b32.xlu0 %v487, 96
    %v505 = vpop.permute.xlu0 %504
    %508 = vst.msk [vmem:[#allocation15] sm:$0xff] %vm157, %v503
    %509 = vst.msk [vmem:[#allocation15 + $0x8] sm:$0xff] %vm157, %v505
    %512 = vrot.lane.b32.xlu0 %v498, 64
    %v513 = vpop.permute.xlu0 %512
    %514 = vrot.lane.b32.xlu0 %v499, 64
    %v515 = vpop.permute.xlu0 %514
    %518 = vst.msk [vmem:[#allocation14] sm:$0xff] %vm157, %v513
    %519 = vst.msk [vmem:[#allocation14 + $0x8] sm:$0xff] %vm157, %v515
    // Predicated region
    $region58: #{tpu_custom_call.1} parent=1 // pred_check
      _
    $region59: #{tpu_custom_call.1} parent=1 // pred_check_branch
      %521 = sbr.rel (0) target = $region61
    $region60: #{tpu_custom_call.1} parent=1 // pred_region
      %s523 = ssub.s32 256, 256
      %524 = vsyncadd [#allocation4], %s523
      %s525 = sshll.u32 [#allocation14], 4
      %s526 = int_to_ptr.vmem [resolvable:$true] %s525
      %531 = dma.vmem_to_hbm [thread:$0]  %s526, 256, %s7, [#allocation4], 128, 128, 8
    $region61: #{tpu_custom_call.1} parent=1 // pred_fallthru
      _
    // Predicated region
    $region62: #{tpu_custom_call.1} parent=1 // pred_check
      _
    $region63: #{tpu_custom_call.1} parent=1 // pred_check_branch
      %533 = sbr.rel (0) target = $region65
    $region64: #{tpu_custom_call.1} parent=1 // pred_region
      %s535 = ssub.s32 256, 256
      %536 = vsyncadd [#allocation16], %s535
      %s537 = sshll.u32 [#allocation15], 4
      %s538 = int_to_ptr.vmem [resolvable:$true] %s537
      %543 = dma.vmem_to_hbm [thread:$0]  %s538, 256, %s8, [#allocation16], 128, 128, 8
    $region65: #{tpu_custom_call.1} parent=1 // pred_fallthru
      _
    // Predicated region
    $region66: #{tpu_custom_call.1} parent=1 // pred_check
      _
    $region67: #{tpu_custom_call.1} parent=1 // pred_check_branch
      %545 = sbr.rel (0) target = $region69
    $region68: #{tpu_custom_call.1} parent=1 // pred_region
      %546 = dma.done [#allocation4], 256
    $region69: #{tpu_custom_call.1} parent=1 // pred_fallthru
      _
    // Predicated region
    $region70: #{tpu_custom_call.1} parent=1 // pred_check
      _
    $region71: #{tpu_custom_call.1} parent=1 // pred_check_branch
      %548 = sbr.rel (0) target = $region73
    $region72: #{tpu_custom_call.1} parent=1 // pred_region
      %549 = dma.done [#allocation16], 256
    $region73: #{tpu_custom_call.1} parent=1 // pred_fallthru
      _
    %550 = vsyncpa [#allocation3], 1
    %551 = vsyncpa [#allocation6], 1
    %552 = vsyncpa [#allocation9], 1
    %553 = vsyncpa [#allocation12], 1
    %554 = vsyncpa [#allocation4], 1
    %555 = vsyncpa [#allocation16], 1

</llo_original>
